<compile_context>
chip_gen: v7x
topology: tpu7x:2x2x1
jax: 0.10.0
libtpu: 0.0.40
codegen_flags: <defaults>
</compile_context>

<pallas_src>
import functools

import jax
import jax.numpy as jnp
from jax.experimental import pallas as pl
from jax.experimental.pallas import tpu as pltpu

D_IN = 4      # x_in
H = 20        # hidden width
D_OUT = 20    # x_out


def _ru(a, b):
    return (a + b - 1) // b * b


# Packed parameter slab layout. Each band starts on an 8-row (sublane-tile)
# boundary so in-kernel ref slices are sublane-aligned.
ROW_W1 = 0
ROW_W2 = _ru(ROW_W1 + H, 8)              # 24
ROW_W3 = _ru(ROW_W2 + H, 8)              # 48
ROW_W4 = _ru(ROW_W3 + H, 8)              # 72
ROW_B = _ru(ROW_W4 + D_OUT, 8)           # 96  (bias columns 0..3)
P_ROWS = _ru(ROW_B + max(H, D_OUT), 8)   # 120
P_COLS = max(D_IN, H, D_OUT, 4)          # 20


def _softplus(x):
    # torch.nn.Softplus(beta=1, threshold=20): x > 20 -> x, else log1p(exp(x)).
    # No clamp needed: jnp.where is a select; the (possibly inf) unselected
    # branch is never chosen and never produces NaN here.
    return jnp.where(x > 20.0, x, jnp.log1p(jnp.exp(x)))


def mlp_kernel(x_ref, p_ref, o_ref):
    x = x_ref[...]                                   # (D_IN, bn), lane-dense

    w1 = p_ref[ROW_W1:ROW_W1 + H, :][:, :D_IN]       # (H, D_IN)
    w2 = p_ref[ROW_W2:ROW_W2 + H, :]                 # (H, H)
    w3 = p_ref[ROW_W3:ROW_W3 + H, :]                 # (H, H)
    w4 = p_ref[ROW_W4:ROW_W4 + D_OUT, :]             # (D_OUT, H)
    bb = p_ref[ROW_B:ROW_B + max(H, D_OUT), :]       # bias columns
    b1, b2, b3 = bb[:H, 0:1], bb[:H, 1:2], bb[:H, 2:3]
    b4 = bb[:D_OUT, 3:4]

    h = _softplus(jnp.dot(w1, x, preferred_element_type=jnp.float32) + b1)
    h = _softplus(jnp.dot(w2, h, preferred_element_type=jnp.float32) + b2)
    h = _softplus(jnp.dot(w3, h, preferred_element_type=jnp.float32) + b3)
    h = jnp.dot(w4, h, preferred_element_type=jnp.float32) + b4
    o_ref[...] = h.astype(o_ref.dtype)


def pack_params(params):
    """Pack 4 (W, b) pairs (W in PyTorch (out, in) layout) into one f32 slab."""
    (w1, b1), (w2, b2), (w3, b3), (w4, b4) = params
    slab = jnp.zeros((P_ROWS, P_COLS), jnp.float32)
    slab = slab.at[ROW_W1:ROW_W1 + H, :D_IN].set(w1.astype(jnp.float32))
    slab = slab.at[ROW_W2:ROW_W2 + H, :H].set(w2.astype(jnp.float32))
    slab = slab.at[ROW_W3:ROW_W3 + H, :H].set(w3.astype(jnp.float32))
    slab = slab.at[ROW_W4:ROW_W4 + D_OUT, :H].set(w4.astype(jnp.float32))
    slab = slab.at[ROW_B:ROW_B + H, 0].set(b1.astype(jnp.float32))
    slab = slab.at[ROW_B:ROW_B + H, 1].set(b2.astype(jnp.float32))
    slab = slab.at[ROW_B:ROW_B + H, 2].set(b3.astype(jnp.float32))
    slab = slab.at[ROW_B:ROW_B + D_OUT, 3].set(b4.astype(jnp.float32))
    return slab


@functools.partial(jax.jit, static_argnames=("block_n",))
def model_latent_f(x, params, *, block_n=512):
    """Fused MLP forward. x: (N, D_IN). Returns (N, D_OUT) float32."""
    N = x.shape[0]

    # Lane-aligned batch tile: multiple of 128, at most block_n; prefer >= 2
    # grid steps (v7x megacore) when the batch is large enough.
    bn = min(block_n, _ru(N, 128))
    if _ru(N, bn) // bn < 2 and N > 128:
        bn = _ru(pl.cdiv(N, 2), 128)
    bn = max(bn, 128)
    n_pad = _ru(N, bn)
    grid = (n_pad // bn,)

    # (features, batch) layout; padded batch columns are zero and sliced off.
    x_t = jnp.zeros((D_IN, n_pad), jnp.float32).at[:, :N].set(
        x.astype(jnp.float32).T)
    slab = pack_params(params)

    out_t = pl.pallas_call(
        mlp_kernel,
        out_shape=jax.ShapeDtypeStruct((D_OUT, n_pad), jnp.float32),
        grid_spec=pltpu.PrefetchScalarGridSpec(
            num_scalar_prefetch=0,
            grid=grid,
            in_specs=[
                pl.BlockSpec((D_IN, bn), lambda i: (0, i)),       # x tile
                pl.BlockSpec((P_ROWS, P_COLS), lambda i: (0, 0)),  # params slab
            ],
            out_specs=pl.BlockSpec((D_OUT, bn), lambda i: (0, i)),
        ),
        compiler_params=pltpu.CompilerParams(
            dimension_semantics=("parallel",)),
    )(x_t, slab)

    return out_t[:, :N].T


def init_params(key):
    """PyTorch-style Kaiming-uniform init; weights stored (out, in) like nn.Linear."""
    dims = [(D_IN, H), (H, H), (H, H), (H, D_OUT)]
    params = []
    for fan_in, fan_out in dims:
        key, kw, kb = jax.random.split(key, 3)
        bound = 1.0 / float(fan_in) ** 0.5
        w = jax.random.uniform(kw, (fan_out, fan_in), jnp.float32,
                               minval=-bound, maxval=bound)
        b = jax.random.uniform(kb, (fan_out,), jnp.float32,
                               minval=-bound, maxval=bound)
        params.append((w, b))
    return params


def reference_forward(x, params):
    h = x.astype(jnp.float32)
    for i, (w, b) in enumerate(params):
        h = h @ w.T + b
        if i < len(params) - 1:
            h = _softplus(h)
    return h


if __name__ == "__main__":
    key = jax.random.PRNGKey(0)
    key, kx = jax.random.split(key)

    N = 256  # two 128-wide lane tiles -> 2 grid steps even at small scale
    x = jax.random.normal(kx, (N, D_IN), jnp.float32)
    params = init_params(key)

    out = jax.block_until_ready(model_latent_f(x, params, block_n=128))

    ref = reference_forward(x, params)
    assert out.shape == (N, D_OUT)
    assert jnp.allclose(out, ref, atol=1e-5, rtol=1e-5), "mismatch vs reference"

    print("KERNEL_OK")
</pallas_src>

<mosaic_0001>
module attributes {stable_mosaic.version = 11 : i64} {
  func.func @mlp_kernel(%arg0: i32, %arg1: memref<4x128xf32, #tpu.memory_space<vmem>>, %arg2: memref<120x20xf32, #tpu.memory_space<vmem>>, %arg3: memref<20x128xf32, #tpu.memory_space<vmem>>) attributes {dimension_semantics = [#tpu.dimension_semantics<parallel>], iteration_bounds = array<i64: 2>, scalar_prefetch = 0 : i64, scratch_operands = 0 : i64, tpu.core_type = #tpu.core_type<tc>, window_params = [{transform_indices = @transform_0, window_bounds = array<i64: 4, 128>}, {pipeline_mode = #tpu.pipeline_mode<synchronous>, transform_indices = @transform_1, window_bounds = array<i64: 120, 20>}, {transform_indices = @transform_2, window_bounds = array<i64: 20, 128>}]} {
    %c0 = arith.constant 0 : index
    %c0_0 = arith.constant 0 : index
    %0 = vector.load %arg1[%c0, %c0_0] : memref<4x128xf32, #tpu.memory_space<vmem>>, vector<4x128xf32>
    %c0_1 = arith.constant 0 : index
    %c0_2 = arith.constant 0 : index
    %1 = vector.load %arg2[%c0_1, %c0_2] : memref<120x20xf32, #tpu.memory_space<vmem>>, vector<20x20xf32>
    %2 = vector.extract_strided_slice %1 {offsets = [0, 0], sizes = [20, 4], strides = [1, 1]} : vector<20x20xf32> to vector<20x4xf32>
    %c24 = arith.constant 24 : index
    %c0_3 = arith.constant 0 : index
    %3 = vector.load %arg2[%c24, %c0_3] : memref<120x20xf32, #tpu.memory_space<vmem>>, vector<20x20xf32>
    %c48 = arith.constant 48 : index
    %c0_4 = arith.constant 0 : index
    %4 = vector.load %arg2[%c48, %c0_4] : memref<120x20xf32, #tpu.memory_space<vmem>>, vector<20x20xf32>
    %c72 = arith.constant 72 : index
    %c0_5 = arith.constant 0 : index
    %5 = vector.load %arg2[%c72, %c0_5] : memref<120x20xf32, #tpu.memory_space<vmem>>, vector<20x20xf32>
    %c96 = arith.constant 96 : index
    %c0_6 = arith.constant 0 : index
    %6 = vector.load %arg2[%c96, %c0_6] : memref<120x20xf32, #tpu.memory_space<vmem>>, vector<20x20xf32>
    %7 = vector.extract_strided_slice %6 {offsets = [0, 0], sizes = [20, 1], strides = [1, 1]} : vector<20x20xf32> to vector<20x1xf32>
    %8 = vector.extract_strided_slice %6 {offsets = [0, 1], sizes = [20, 1], strides = [1, 1]} : vector<20x20xf32> to vector<20x1xf32>
    %9 = vector.extract_strided_slice %6 {offsets = [0, 2], sizes = [20, 1], strides = [1, 1]} : vector<20x20xf32> to vector<20x1xf32>
    %10 = vector.extract_strided_slice %6 {offsets = [0, 3], sizes = [20, 1], strides = [1, 1]} : vector<20x20xf32> to vector<20x1xf32>
    %cst = arith.constant dense<0.000000e+00> : vector<20x128xf32>
    %11 = tpu.matmul %2, %0, %cst {dimension_numbers = #tpu.dot_dimension_numbers<[1], [0], [0], [1], [0, 0, 1, 1], [], []>} : vector<20x4xf32>, vector<4x128xf32>, vector<20x128xf32> -> vector<20x128xf32>
    %12 = vector.broadcast %7 : vector<20x1xf32> to vector<20x128xf32>
    %13 = arith.addf %11, %12 : vector<20x128xf32>
    %cst_7 = arith.constant 2.000000e+01 : f32
    %14 = vector.broadcast %cst_7 : f32 to vector<20x128xf32>
    %15 = arith.cmpf ogt, %13, %14 : vector<20x128xf32>
    %16 = math.exp %13 : vector<20x128xf32>
    %17 = math.log1p %16 : vector<20x128xf32>
    %18 = arith.select %15, %13, %17 : vector<20x128xi1>, vector<20x128xf32>
    %cst_8 = arith.constant dense<0.000000e+00> : vector<20x128xf32>
    %19 = tpu.matmul %3, %18, %cst_8 {dimension_numbers = #tpu.dot_dimension_numbers<[1], [0], [0], [1], [0, 0, 1, 1], [], []>} : vector<20x20xf32>, vector<20x128xf32>, vector<20x128xf32> -> vector<20x128xf32>
    %20 = vector.broadcast %8 : vector<20x1xf32> to vector<20x128xf32>
    %21 = arith.addf %19, %20 : vector<20x128xf32>
    %cst_9 = arith.constant 2.000000e+01 : f32
    %22 = vector.broadcast %cst_9 : f32 to vector<20x128xf32>
    %23 = arith.cmpf ogt, %21, %22 : vector<20x128xf32>
    %24 = math.exp %21 : vector<20x128xf32>
    %25 = math.log1p %24 : vector<20x128xf32>
    %26 = arith.select %23, %21, %25 : vector<20x128xi1>, vector<20x128xf32>
    %cst_10 = arith.constant dense<0.000000e+00> : vector<20x128xf32>
    %27 = tpu.matmul %4, %26, %cst_10 {dimension_numbers = #tpu.dot_dimension_numbers<[1], [0], [0], [1], [0, 0, 1, 1], [], []>} : vector<20x20xf32>, vector<20x128xf32>, vector<20x128xf32> -> vector<20x128xf32>
    %28 = vector.broadcast %9 : vector<20x1xf32> to vector<20x128xf32>
    %29 = arith.addf %27, %28 : vector<20x128xf32>
    %cst_11 = arith.constant 2.000000e+01 : f32
    %30 = vector.broadcast %cst_11 : f32 to vector<20x128xf32>
    %31 = arith.cmpf ogt, %29, %30 : vector<20x128xf32>
    %32 = math.exp %29 : vector<20x128xf32>
    %33 = math.log1p %32 : vector<20x128xf32>
    %34 = arith.select %31, %29, %33 : vector<20x128xi1>, vector<20x128xf32>
    %cst_12 = arith.constant dense<0.000000e+00> : vector<20x128xf32>
    %35 = tpu.matmul %5, %34, %cst_12 {dimension_numbers = #tpu.dot_dimension_numbers<[1], [0], [0], [1], [0, 0, 1, 1], [], []>} : vector<20x20xf32>, vector<20x128xf32>, vector<20x128xf32> -> vector<20x128xf32>
    %36 = vector.broadcast %10 : vector<20x1xf32> to vector<20x128xf32>
    %37 = arith.addf %35, %36 : vector<20x128xf32>
    %c0_13 = arith.constant 0 : index
    %c0_14 = arith.constant 0 : index
    %38 = vector.load %arg3[%c0_13, %c0_14] : memref<20x128xf32, #tpu.memory_space<vmem>>, vector<20x128xf32>
    tpu.vector_store %arg3[%c0_13, %c0_14], %37 {strides = array<i32>} : memref<20x128xf32, #tpu.memory_space<vmem>>, vector<20x128xf32>,
    return
  }
  func.func @transform_0(%arg0: i32) -> (i32, i32) {
    %c0_i32 = arith.constant 0 : i32
    %c0_i32_0 = arith.constant 0 : i32
    return %c0_i32, %arg0 : i32, i32
  }
  func.func @transform_1(%arg0: i32) -> (i32, i32) {
    %c0_i32 = arith.constant 0 : i32
    %c0_i32_0 = arith.constant 0 : i32
    %c0_i32_1 = arith.constant 0 : i32
    return %c0_i32, %c0_i32_0 : i32, i32
  }
  func.func @transform_2(%arg0: i32) -> (i32, i32) {
    %c0_i32 = arith.constant 0 : i32
    %c0_i32_0 = arith.constant 0 : i32
    return %c0_i32, %arg0 : i32, i32
  }
}

</mosaic_0001>

<llo_original>
// kernel: model_latent_f.1
$region0: #{model_latent_f.1}
  #allocation0 [shape = 'u32[]', space=smem, size = 0x4, offset = 0x4, fixed_abs, tag = 'smem constant byte address 0x4 - core index']
  #allocation1 [shape = 'u32[144,128]{1,0:T(1,128)}', space=vmem, size = 0x12000, scoped, tag = 'internal scratch']
  %s0 = inlined_call_operand.vmem [shape: f32[4,256], index: 0, kind: input, shape index: {}]
  %s1 = inlined_call_operand.vmem [shape: f32[120,20], index: 1, kind: input, shape index: {}]
  %s2 = inlined_call_operand.hbm [shape: f32[20,256], index: 2, kind: output, shape index: {}]
  %s3 = sld [smem:[#allocation0]]
  $region41: #{model_latent_f.1} parent=0
    _
  %s5 = ssub.s32 1, %s3
  %s6 = scalar_select 0, %s5, %s3
  $region1: #{model_latent_f.1} parent=0
    #allocation2 [shape = 'u8[24576]{0}', space=vmem, size = 0x6000, scoped, tag = 'output window, operand 0']
    #allocation3 [shape = 's32[2]{0}', space=sflag, size = 0x8, scoped, tag = 'scoped memory for model_latent_f.1']
    %7 = vsyncpa [#allocation3], 0
    %s8 = scalar_lea.sflag [#allocation3], 1
    %9 = vsyncpa %s8, 0
    loop: start=0, step=1, limit=4
    $region2: #{model_latent_f.1} parent=1 // loop_pre_header
      _
    $region3: #{model_latent_f.1} parent=1 // loop_header
      %s11 = sphi 0, %s15
      %p12 = scmp.ge.s32.totalorder %s11, 4
      %s21 = sphi 0, %s23
      %s24 = sphi 0, %s21
      %s25 = sphi 0, %s24
      %s41 = sphi 0, %s25
      %s45 = sphi 0, %s45
      %s47 = sphi 0, %s45
      %s48 = sphi 0, %s47
      %s62 = sphi 0, %s48
      %s68 = sphi 0, %s70
      %s71 = sphi 0, %s68
      %s72 = sphi 0, %s71
      %s88 = sphi 0, %s72
    $region4: #{model_latent_f.1} parent=1 // loop_header_branch
      %14 = sbr.rel (%p12) target = $region8
    $region5: #{model_latent_f.1} parent=1 // loop_body
      %s16 = ssub.s32 %s11, 1
      %s17 = ssub.s32 %s11, 2
      %s18 = sadd.s32 %s11, 1
      %s19 = ssub.s32 %s11, %s18
      %p20 = scmp.eq.s32.totalorder %s19, 0
      %s22 = sadd.s32 %s21, 1
      %s23 = scalar_select %p20, %s21, %s22
      %p26 = pneg %p20
      %p27 = scmp.eq.s32.totalorder %s11, 1
      %p28 = por %p26, %p27
      %p29 = scmp.ne.s32.totalorder %s21, %s24
      %p30 = scmp.eq.s32.totalorder %s11, 0
      %p31 = por %p29, %p30
      %p32 = scmp.ne.s32.totalorder %s21, %s24
      %p33 = scmp.eq.s32.totalorder %s16, 1
      %p34 = por %p32, %p33
      %p35 = scmp.ne.s32.totalorder %s24, %s25
      %p36 = scmp.eq.s32.totalorder %s16, 0
      %p37 = por %p35, %p36
      %p38 = scmp.ne.s32.totalorder %s24, %s25
      %p39 = scmp.eq.s32.totalorder %s17, 1
      %p40 = por %p38, %p39
      %p42 = scmp.ne.s32.totalorder %s25, %s41
      %p43 = scmp.eq.s32.totalorder %s17, 0
      %p44 = por %p42, %p43
      %s46 = sadd.s32 %s45, 1
      %p49 = scmp.eq.s32.totalorder %s11, 1
      %p50 = scmp.ne.s32.totalorder %s45, %s47
      %p51 = scmp.eq.s32.totalorder %s11, 0
      %p52 = por %p50, %p51
      %p53 = scmp.ne.s32.totalorder %s45, %s47
      %p54 = scmp.eq.s32.totalorder %s16, 1
      %p55 = por %p53, %p54
      %p56 = scmp.ne.s32.totalorder %s47, %s48
      %p57 = scmp.eq.s32.totalorder %s16, 0
      %p58 = por %p56, %p57
      %p59 = scmp.ne.s32.totalorder %s47, %s48
      %p60 = scmp.eq.s32.totalorder %s17, 1
      %p61 = por %p59, %p60
      %p63 = scmp.ne.s32.totalorder %s48, %s62
      %p64 = scmp.eq.s32.totalorder %s17, 0
      %p65 = por %p63, %p64
      %s66 = ssub.s32 %s11, %s18
      %p67 = scmp.eq.s32.totalorder %s66, 0
      %s69 = sadd.s32 %s68, 1
      %s70 = scalar_select %p67, %s68, %s69
      %p73 = pneg %p67
      %p74 = scmp.eq.s32.totalorder %s11, 1
      %p75 = por %p73, %p74
      %p76 = scmp.ne.s32.totalorder %s68, %s71
      %p77 = scmp.eq.s32.totalorder %s11, 0
      %p78 = por %p76, %p77
      %p79 = scmp.ne.s32.totalorder %s68, %s71
      %p80 = scmp.eq.s32.totalorder %s16, 1
      %p81 = por %p79, %p80
      %p82 = scmp.ne.s32.totalorder %s71, %s72
      %p83 = scmp.eq.s32.totalorder %s16, 0
      %p84 = por %p82, %p83
      %p85 = scmp.ne.s32.totalorder %s71, %s72
      %p86 = scmp.eq.s32.totalorder %s17, 1
      %p87 = por %p85, %p86
      %p89 = scmp.ne.s32.totalorder %s72, %s88
      %p90 = scmp.eq.s32.totalorder %s17, 0
      %p91 = por %p89, %p90
      %p92 = scmp.le.s32.totalorder 1, %s11
      %p93 = scmp.lt.s32.totalorder %s11, 3
      %p94 = pnand %p92, %p93
      %p95 = pneg %p94
      // Predicated region
      $region9: #{model_latent_f.1} parent=5 // pred_check
        _
      $region10: #{model_latent_f.1} parent=5 // pred_check_branch
        %97 = sbr.rel (%p94) target = $region12
      $region11: #{model_latent_f.1} parent=5 // pred_region
        %s98 = ssub.s32 %s11, 1
        // Predicated region
        $region13: #{model_latent_f.1} parent=11 // pred_check
          %p99 = pneg %p58
        $region14: #{model_latent_f.1} parent=11 // pred_check_branch
          %101 = sbr.rel (%p99) target = $region16
        $region15: #{model_latent_f.1} parent=11 // pred_region
          _
        $region16: #{model_latent_f.1} parent=11 // pred_fallthru
          _
      $region12: #{model_latent_f.1} parent=5 // pred_fallthru
        _
      %p102 = scmp.lt.s32.totalorder %s11, 2
      // Predicated region
      $region17: #{model_latent_f.1} parent=5 // pred_check
        %p103 = pneg %p102
      $region18: #{model_latent_f.1} parent=5 // pred_check_branch
        %105 = sbr.rel (%p103) target = $region20
      $region19: #{model_latent_f.1} parent=5 // pred_region
        // Predicated region
        $region21: #{model_latent_f.1} parent=19 // pred_check
          %p106 = pneg %p31
        $region22: #{model_latent_f.1} parent=19 // pred_check_branch
          %108 = sbr.rel (%p106) target = $region24
        $region23: #{model_latent_f.1} parent=19 // pred_region
          %p109 = scmp.lt.s32.totalorder %s11, 1
          %s110 = scalar_select %p109, %s11, 1
          %s111 = smul.addr %s110, 4
          %s112 = scalar_lea.vmem %s0, %s111
        $region24: #{model_latent_f.1} parent=19 // pred_fallthru
          _
      $region20: #{model_latent_f.1} parent=5 // pred_fallthru
        _
      %p113 = scmp.le.s32.totalorder 1, %s11
      %p114 = scmp.lt.s32.totalorder %s11, 3
      %p115 = pnand %p113, %p114
      %p116 = pneg %p115
      // Predicated region
      $region25: #{model_latent_f.1} parent=5 // pred_check
        _
      $region26: #{model_latent_f.1} parent=5 // pred_check_branch
        %118 = sbr.rel (%p115) target = $region28
      $region27: #{model_latent_f.1} parent=5 // pred_region
        %s119 = ssub.s32 %s11, 1
        %p120 = scmp.lt.s32.totalorder %s16, 1
        %s121 = scalar_select %p120, %s16, 1
        %s122 = smul.addr %s121, 4
        %s123 = scalar_lea.vmem %s0, %s122
        %p124 = pneg %p37
        %p125 = pneg %p34
        %p126 = pneg %p58
        %p127 = pneg %p55
        %p128 = pneg %p84
        %p129 = pneg %p81
        %s130 = sand.u32 %s71, 1
        %s131 = scalar_lea.sflag [#allocation3], %s130
        %s132 = sand.u32 %s71, 1
        %s133 = smul.addr %s132, 24
        %s134 = scalar_lea.vmem [#allocation2], %s133
        %p135 = scmp.lt.s32.totalorder %s16, 1
        %s136 = scalar_select %p135, %s16, 1
        %s137 = smul.addr %s136, 4
        %s138 = scalar_lea.vmem %s0, %s137
        %v139 = vld [vmem:[%s138] sm:$0xf]
        %v140 = vld [vmem:[%s1] sm:$0xff]
        %v141 = vld [vmem:[%s1 + $0x8] sm:$0xff]
        %v142 = vld [vmem:[%s1 + $0x10] sm:$0xf]
        %v143 = vld [vmem:[%s1 + $0x18] sm:$0xff]
        %v144 = vld [vmem:[%s1 + $0x20] sm:$0xff]
        %v145 = vld [vmem:[%s1 + $0x28] sm:$0xf]
        %v146 = vld [vmem:[%s1 + $0x30] sm:$0xff]
        %v147 = vld [vmem:[%s1 + $0x38] sm:$0xff]
        %v148 = vld [vmem:[%s1 + $0x40] sm:$0xf]
        %v149 = vld [vmem:[%s1 + $0x48] sm:$0xff]
        %v150 = vld [vmem:[%s1 + $0x50] sm:$0xff]
        %v151 = vld [vmem:[%s1 + $0x58] sm:$0xf]
        %v152 = vld [vmem:[%s1 + $0x60] sm:$0xff]
        %v153 = vld [vmem:[%s1 + $0x68] sm:$0xff]
        %v154 = vld [vmem:[%s1 + $0x70] sm:$0xf]
        %156 = vset.pattern.permute.xlu0 0
        %157 = vperm.xlu0 %156, %v152
        %v158 = vpop.permute.xlu0 %157
        %161 = vset.pattern.permute.xlu0 0
        %162 = vperm.xlu0 %161, %v153
        %v163 = vpop.permute.xlu0 %162
        %166 = vset.pattern.permute.xlu0 0
        %167 = vperm.xlu0 %166, %v154
        %v168 = vpop.permute.xlu0 %167
        %vm170 = vcmask 31744
        %v172 = vsel %vm170, %v140, 0
        %v175 = vsel %vm170, %v141, 0
        %v178 = vsel %vm170, %v142, 0
        %vm180 = vcmask 1043456
        %v182 = vsel %vm180, %v139, 0
        %184 = vmatprep.subr.mxu0 0.0
        %185 = vmatpush1.msra.mxu0 %v182
        %186 = vmatprep.subr.mxu0 0.0
        %187 = vmatpush1.msra.mxu0 0.0
        %188 = vmatprep.subr.mxu0 0.0
        %189 = vmatpush1.msra.mxu0 0.0
        %190 = vmatprep.subr.mxu0 0.0
        %191 = vmatpush1.msra.mxu0 0.0
        %192 = vmatprep.subr.mxu0 0.0
        %193 = vmatpush1.msra.mxu0 0.0
        %194 = vmatprep.subr.mxu0 0.0
        %195 = vmatpush1.msra.mxu0 0.0
        %196 = vmatprep.subr.mxu0 0.0
        %197 = vmatpush1.msra.mxu0 0.0
        %198 = vmatprep.subr.mxu0 0.0
        %199 = vmatpush1.msra.mxu0 0.0
        %200 = vmatprep.subr.mxu0 0.0
        %201 = vmatpush1.msra.mxu0 0.0
        %202 = vmatprep.subr.mxu0 0.0
        %203 = vmatpush1.msra.mxu0 0.0
        %204 = vmatprep.subr.mxu0 0.0
        %205 = vmatpush1.msra.mxu0 0.0
        %206 = vmatprep.subr.mxu0 0.0
        %207 = vmatpush1.msra.mxu0 0.0
        %208 = vmatprep.subr.mxu0 0.0
        %209 = vmatpush1.msra.mxu0 0.0
        %210 = vmatprep.subr.mxu0 0.0
        %211 = vmatpush1.msra.mxu0 0.0
        %212 = vmatprep.subr.mxu0 0.0
        %213 = vmatpush1.msra.mxu0 0.0
        %214 = vmatprep.subr.mxu0 0.0
        %215 = vmatpush1.msra.mxu0 0.0
        %216 = vmatprep.subr.mxu0 0.0
        %217 = vmatpush1.msra.mxu0 0.0
        %218 = vmatprep.subr.mxu0 0.0
        %219 = vmatpush1.msra.mxu0 0.0
        %220 = vmatprep.subr.mxu0 0.0
        %221 = vmatpush1.msra.mxu0 0.0
        %222 = vmatprep.subr.mxu0 0.0
        %223 = vmatpush1.msra.mxu0 0.0
        %224 = vmatprep.subr.mxu0 0.0
        %225 = vmatpush1.msra.mxu0 0.0
        %226 = vmatprep.subr.mxu0 0.0
        %227 = vmatpush1.msra.mxu0 0.0
        %228 = vmatprep.subr.mxu0 0.0
        %229 = vmatpush1.msra.mxu0 0.0
        %230 = vmatprep.subr.mxu0 0.0
        %231 = vmatpush1.msra.mxu0 0.0
        %232 = vmatprep.subr.mxu0 0.0
        %233 = vmatpush1.msra.mxu0 0.0
        %234 = vmatprep.subr.mxu0 0.0
        %235 = vmatpush1.msra.mxu0 0.0
        %236 = vmatprep.subr.mxu0 0.0
        %237 = vmatpush1.msra.mxu0 0.0
        %238 = vmatprep.subr.mxu0 0.0
        %239 = vmatpush1.msra.mxu0 0.0
        %240 = vmatprep.subr.mxu0 0.0
        %241 = vmatpush1.msra.mxu0 0.0
        %242 = vmatprep.subr.mxu0 0.0
        %243 = vmatpush1.msra.mxu0 0.0
        %244 = vmatprep.subr.mxu0 0.0
        %245 = vmatpush1.msra.mxu0 0.0
        %246 = vmatprep.subr.mxu0 0.0
        %247 = vmatpush1.msra.mxu0 0.0
        %248 = vmatprep.mubr.f32.mxu0 0.0
        %249 = vmatmul.mubr.f32.gmra.mrb[0].mxu0 %v172
        %v250 = vpop.f32.mrb[0].mxu0
        %v251 = vadd.f32 %v158, %v250
        %v252 = vpop.f32.mrb[0].mxu0
        %253 = vmatprep.mubr.f32.mxu0 0.0
        %254 = vmatmul.mubr.f32.gmra.mrb[0].mxu0 %v175
        %v255 = vpop.f32.mrb[0].mxu0
        %v256 = vadd.f32 %v163, %v255
        %v257 = vpop.f32.mrb[0].mxu0
        %258 = vmatprep.mubr.f32.mxu0 0.0
        %259 = vmatmul.mubr.f32.gmra.mrb[0].mxu0 %v178
        %v260 = vpop.f32.mrb[0].mxu0
        %v261 = vadd.f32 %v168, %v260
        %v262 = vpop.f32.mrb[0].mxu0
        %263 = vdwg.mxu0
        %vm264 = vcmp.gt.f32.partialorder %v251, 20.0
        %vm265 = vcmp.gt.f32.partialorder %v256, 20.0
        %vm266 = vcmp.gt.f32.partialorder %v261, 20.0
        %v267 = vmul.f32 %v251, 1.442695
        %v268 = vpow.pop %v267
        %v269 = vmul.f32 %v256, 1.442695
        %v270 = vpow.pop %v269
        %v271 = vmul.f32 %v261, 1.442695
        %v272 = vpow.pop %v271
        %v273 = vadd.f32 %v268, 1.0
        %v274 = vlog2.pop %v273
        %v275 = vmul.f32 %v274, 0.6931472
        %v276 = vmul.f32 -0.5, %v268
        %v277 = vadd.f32 %v276, 1.0
        %v278 = vmul.f32 %v277, %v268
        %v279 = vand.u32 2147483647, %v268
        %vm280 = vcmp.lt.f32.partialorder %v279, 0.0004427343
        %v281 = vsel %vm280, %v278, %v275
        %v282 = vadd.f32 %v270, 1.0
        %v283 = vlog2.pop %v282
        %v284 = vmul.f32 %v283, 0.6931472
        %v285 = vmul.f32 -0.5, %v270
        %v286 = vadd.f32 %v285, 1.0
        %v287 = vmul.f32 %v286, %v270
        %v288 = vand.u32 2147483647, %v270
        %vm289 = vcmp.lt.f32.partialorder %v288, 0.0004427343
        %v290 = vsel %vm289, %v287, %v284
        %v291 = vadd.f32 %v272, 1.0
        %v292 = vlog2.pop %v291
        %v293 = vmul.f32 %v292, 0.6931472
        %v294 = vmul.f32 -0.5, %v272
        %v295 = vadd.f32 %v294, 1.0
        %v296 = vmul.f32 %v295, %v272
        %v297 = vand.u32 2147483647, %v272
        %vm298 = vcmp.lt.f32.partialorder %v297, 0.0004427343
        %v299 = vsel %vm298, %v296, %v293
        %v300 = vsel %vm264, %v251, %v281
        %v301 = vsel %vm265, %v256, %v290
        %v302 = vsel %vm266, %v261, %v299
        %303 = vset.pattern.permute.xlu0 1
        %304 = vperm.xlu0 %303, %v152
        %v305 = vpop.permute.xlu0 %304
        %307 = vset.pattern.permute.xlu0 1
        %308 = vperm.xlu0 %307, %v153
        %v309 = vpop.permute.xlu0 %308
        %311 = vset.pattern.permute.xlu0 1
        %312 = vperm.xlu0 %311, %v154
        %v313 = vpop.permute.xlu0 %312
        %vm315 = vcmask 162816
        %v317 = vsel %vm315, %v143, 0
        %v320 = vsel %vm315, %v144, 0
        %v323 = vsel %vm315, %v145, 0
        %v326 = vsel %vm180, %v302, 0
        %328 = vmatprep.subr.mxu0 0.0
        %329 = vmatpush1.msra.mxu0 %v300
        %330 = vmatprep.subr.mxu0 0.0
        %331 = vmatpush1.msra.mxu0 %v301
        %332 = vmatprep.subr.mxu0 0.0
        %333 = vmatpush1.msra.mxu0 %v326
        %334 = vmatprep.subr.mxu0 0.0
        %335 = vmatpush1.msra.mxu0 0.0
        %336 = vmatprep.subr.mxu0 0.0
        %337 = vmatpush1.msra.mxu0 0.0
        %338 = vmatprep.subr.mxu0 0.0
        %339 = vmatpush1.msra.mxu0 0.0
        %340 = vmatprep.subr.mxu0 0.0
        %341 = vmatpush1.msra.mxu0 0.0
        %342 = vmatprep.subr.mxu0 0.0
        %343 = vmatpush1.msra.mxu0 0.0
        %344 = vmatprep.subr.mxu0 0.0
        %345 = vmatpush1.msra.mxu0 0.0
        %346 = vmatprep.subr.mxu0 0.0
        %347 = vmatpush1.msra.mxu0 0.0
        %348 = vmatprep.subr.mxu0 0.0
        %349 = vmatpush1.msra.mxu0 0.0
        %350 = vmatprep.subr.mxu0 0.0
        %351 = vmatpush1.msra.mxu0 0.0
        %352 = vmatprep.subr.mxu0 0.0
        %353 = vmatpush1.msra.mxu0 0.0
        %354 = vmatprep.subr.mxu0 0.0
        %355 = vmatpush1.msra.mxu0 0.0
        %356 = vmatprep.subr.mxu0 0.0
        %357 = vmatpush1.msra.mxu0 0.0
        %358 = vmatprep.subr.mxu0 0.0
        %359 = vmatpush1.msra.mxu0 0.0
        %360 = vmatprep.subr.mxu0 0.0
        %361 = vmatpush1.msra.mxu0 0.0
        %362 = vmatprep.subr.mxu0 0.0
        %363 = vmatpush1.msra.mxu0 0.0
        %364 = vmatprep.subr.mxu0 0.0
        %365 = vmatpush1.msra.mxu0 0.0
        %366 = vmatprep.subr.mxu0 0.0
        %367 = vmatpush1.msra.mxu0 0.0
        %368 = vmatprep.subr.mxu0 0.0
        %369 = vmatpush1.msra.mxu0 0.0
        %370 = vmatprep.subr.mxu0 0.0
        %371 = vmatpush1.msra.mxu0 0.0
        %372 = vmatprep.subr.mxu0 0.0
        %373 = vmatpush1.msra.mxu0 0.0
        %374 = vmatprep.subr.mxu0 0.0
        %375 = vmatpush1.msra.mxu0 0.0
        %376 = vmatprep.subr.mxu0 0.0
        %377 = vmatpush1.msra.mxu0 0.0
        %378 = vmatprep.subr.mxu0 0.0
        %379 = vmatpush1.msra.mxu0 0.0
        %380 = vmatprep.subr.mxu0 0.0
        %381 = vmatpush1.msra.mxu0 0.0
        %382 = vmatprep.subr.mxu0 0.0
        %383 = vmatpush1.msra.mxu0 0.0
        %384 = vmatprep.subr.mxu0 0.0
        %385 = vmatpush1.msra.mxu0 0.0
        %386 = vmatprep.subr.mxu0 0.0
        %387 = vmatpush1.msra.mxu0 0.0
        %388 = vmatprep.subr.mxu0 0.0
        %389 = vmatpush1.msra.mxu0 0.0
        %390 = vmatprep.subr.mxu0 0.0
        %391 = vmatpush1.msra.mxu0 0.0
        %392 = vmatprep.mubr.f32.mxu0 0.0
        %393 = vmatmul.mubr.f32.gmra.mrb[0].mxu0 %v317
        %v394 = vpop.f32.mrb[0].mxu0
        %v395 = vadd.f32 %v305, %v394
        %v396 = vpop.f32.mrb[0].mxu0
        %397 = vmatprep.mubr.f32.mxu0 0.0
        %398 = vmatmul.mubr.f32.gmra.mrb[0].mxu0 %v320
        %v399 = vpop.f32.mrb[0].mxu0
        %v400 = vadd.f32 %v309, %v399
        %v401 = vpop.f32.mrb[0].mxu0
        %402 = vmatprep.mubr.f32.mxu0 0.0
        %403 = vmatmul.mubr.f32.gmra.mrb[0].mxu0 %v323
        %v404 = vpop.f32.mrb[0].mxu0
        %v405 = vadd.f32 %v313, %v404
        %v406 = vpop.f32.mrb[0].mxu0
        %407 = vdwg.mxu0
        %vm408 = vcmp.gt.f32.partialorder %v395, 20.0
        %vm409 = vcmp.gt.f32.partialorder %v400, 20.0
        %vm410 = vcmp.gt.f32.partialorder %v405, 20.0
        %v411 = vmul.f32 %v395, 1.442695
        %v412 = vpow.pop %v411
        %v413 = vmul.f32 %v400, 1.442695
        %v414 = vpow.pop %v413
        %v415 = vmul.f32 %v405, 1.442695
        %v416 = vpow.pop %v415
        %v417 = vadd.f32 %v412, 1.0
        %v418 = vlog2.pop %v417
        %v419 = vmul.f32 %v418, 0.6931472
        %v420 = vmul.f32 -0.5, %v412
        %v421 = vadd.f32 %v420, 1.0
        %v422 = vmul.f32 %v421, %v412
        %v423 = vand.u32 2147483647, %v412
        %vm424 = vcmp.lt.f32.partialorder %v423, 0.0004427343
        %v425 = vsel %vm424, %v422, %v419
        %v426 = vadd.f32 %v414, 1.0
        %v427 = vlog2.pop %v426
        %v428 = vmul.f32 %v427, 0.6931472
        %v429 = vmul.f32 -0.5, %v414
        %v430 = vadd.f32 %v429, 1.0
        %v431 = vmul.f32 %v430, %v414
        %v432 = vand.u32 2147483647, %v414
        %vm433 = vcmp.lt.f32.partialorder %v432, 0.0004427343
        %v434 = vsel %vm433, %v431, %v428
        %v435 = vadd.f32 %v416, 1.0
        %v436 = vlog2.pop %v435
        %v437 = vmul.f32 %v436, 0.6931472
        %v438 = vmul.f32 -0.5, %v416
        %v439 = vadd.f32 %v438, 1.0
        %v440 = vmul.f32 %v439, %v416
        %v441 = vand.u32 2147483647, %v416
        %vm442 = vcmp.lt.f32.partialorder %v441, 0.0004427343
        %v443 = vsel %vm442, %v440, %v437
        %v444 = vsel %vm408, %v395, %v425
        %v445 = vsel %vm409, %v400, %v434
        %v446 = vsel %vm410, %v405, %v443
        %447 = vset.pattern.permute.xlu0 2
        %448 = vperm.xlu0 %447, %v152
        %v449 = vpop.permute.xlu0 %448
        %451 = vset.pattern.permute.xlu0 2
        %452 = vperm.xlu0 %451, %v153
        %v453 = vpop.permute.xlu0 %452
        %455 = vset.pattern.permute.xlu0 2
        %456 = vperm.xlu0 %455, %v154
        %v457 = vpop.permute.xlu0 %456
        %v460 = vsel %vm315, %v146, 0
        %v463 = vsel %vm315, %v147, 0
        %v466 = vsel %vm315, %v148, 0
        %v469 = vsel %vm180, %v446, 0
        %471 = vmatprep.subr.mxu0 0.0
        %472 = vmatpush1.msra.mxu0 %v444
        %473 = vmatprep.subr.mxu0 0.0
        %474 = vmatpush1.msra.mxu0 %v445
        %475 = vmatprep.subr.mxu0 0.0
        %476 = vmatpush1.msra.mxu0 %v469
        %477 = vmatprep.subr.mxu0 0.0
        %478 = vmatpush1.msra.mxu0 0.0
        %479 = vmatprep.subr.mxu0 0.0
        %480 = vmatpush1.msra.mxu0 0.0
        %481 = vmatprep.subr.mxu0 0.0
        %482 = vmatpush1.msra.mxu0 0.0
        %483 = vmatprep.subr.mxu0 0.0
        %484 = vmatpush1.msra.mxu0 0.0
        %485 = vmatprep.subr.mxu0 0.0
        %486 = vmatpush1.msra.mxu0 0.0
        %487 = vmatprep.subr.mxu0 0.0
        %488 = vmatpush1.msra.mxu0 0.0
        %489 = vmatprep.subr.mxu0 0.0
        %490 = vmatpush1.msra.mxu0 0.0
        %491 = vmatprep.subr.mxu0 0.0
        %492 = vmatpush1.msra.mxu0 0.0
        %493 = vmatprep.subr.mxu0 0.0
        %494 = vmatpush1.msra.mxu0 0.0
        %495 = vmatprep.subr.mxu0 0.0
        %496 = vmatpush1.msra.mxu0 0.0
        %497 = vmatprep.subr.mxu0 0.0
        %498 = vmatpush1.msra.mxu0 0.0
        %499 = vmatprep.subr.mxu0 0.0
        %500 = vmatpush1.msra.mxu0 0.0
        %501 = vmatprep.subr.mxu0 0.0
        %502 = vmatpush1.msra.mxu0 0.0
        %503 = vmatprep.subr.mxu0 0.0
        %504 = vmatpush1.msra.mxu0 0.0
        %505 = vmatprep.subr.mxu0 0.0
        %506 = vmatpush1.msra.mxu0 0.0
        %507 = vmatprep.subr.mxu0 0.0
        %508 = vmatpush1.msra.mxu0 0.0
        %509 = vmatprep.subr.mxu0 0.0
        %510 = vmatpush1.msra.mxu0 0.0
        %511 = vmatprep.subr.mxu0 0.0
        %512 = vmatpush1.msra.mxu0 0.0
        %513 = vmatprep.subr.mxu0 0.0
        %514 = vmatpush1.msra.mxu0 0.0
        %515 = vmatprep.subr.mxu0 0.0
        %516 = vmatpush1.msra.mxu0 0.0
        %517 = vmatprep.subr.mxu0 0.0
        %518 = vmatpush1.msra.mxu0 0.0
        %519 = vmatprep.subr.mxu0 0.0
        %520 = vmatpush1.msra.mxu0 0.0
        %521 = vmatprep.subr.mxu0 0.0
        %522 = vmatpush1.msra.mxu0 0.0
        %523 = vmatprep.subr.mxu0 0.0
        %524 = vmatpush1.msra.mxu0 0.0
        %525 = vmatprep.subr.mxu0 0.0
        %526 = vmatpush1.msra.mxu0 0.0
        %527 = vmatprep.subr.mxu0 0.0
        %528 = vmatpush1.msra.mxu0 0.0
        %529 = vmatprep.subr.mxu0 0.0
        %530 = vmatpush1.msra.mxu0 0.0
        %531 = vmatprep.subr.mxu0 0.0
        %532 = vmatpush1.msra.mxu0 0.0
        %533 = vmatprep.subr.mxu0 0.0
        %534 = vmatpush1.msra.mxu0 0.0
        %535 = vmatprep.mubr.f32.mxu0 0.0
        %536 = vmatmul.mubr.f32.gmra.mrb[0].mxu0 %v460
        %v537 = vpop.f32.mrb[0].mxu0
        %v538 = vadd.f32 %v449, %v537
        %v539 = vpop.f32.mrb[0].mxu0
        %540 = vmatprep.mubr.f32.mxu0 0.0
        %541 = vmatmul.mubr.f32.gmra.mrb[0].mxu0 %v463
        %v542 = vpop.f32.mrb[0].mxu0
        %v543 = vadd.f32 %v453, %v542
        %v544 = vpop.f32.mrb[0].mxu0
        %545 = vmatprep.mubr.f32.mxu0 0.0
        %546 = vmatmul.mubr.f32.gmra.mrb[0].mxu0 %v466
        %v547 = vpop.f32.mrb[0].mxu0
        %v548 = vadd.f32 %v457, %v547
        %v549 = vpop.f32.mrb[0].mxu0
        %550 = vdwg.mxu0
        %vm551 = vcmp.gt.f32.partialorder %v538, 20.0
        %vm552 = vcmp.gt.f32.partialorder %v543, 20.0
        %vm553 = vcmp.gt.f32.partialorder %v548, 20.0
        %v554 = vmul.f32 %v538, 1.442695
        %v555 = vpow.pop %v554
        %v556 = vmul.f32 %v543, 1.442695
        %v557 = vpow.pop %v556
        %v558 = vmul.f32 %v548, 1.442695
        %v559 = vpow.pop %v558
        %v560 = vadd.f32 %v555, 1.0
        %v561 = vlog2.pop %v560
        %v562 = vmul.f32 %v561, 0.6931472
        %v563 = vmul.f32 -0.5, %v555
        %v564 = vadd.f32 %v563, 1.0
        %v565 = vmul.f32 %v564, %v555
        %v566 = vand.u32 2147483647, %v555
        %vm567 = vcmp.lt.f32.partialorder %v566, 0.0004427343
        %v568 = vsel %vm567, %v565, %v562
        %v569 = vadd.f32 %v557, 1.0
        %v570 = vlog2.pop %v569
        %v571 = vmul.f32 %v570, 0.6931472
        %v572 = vmul.f32 -0.5, %v557
        %v573 = vadd.f32 %v572, 1.0
        %v574 = vmul.f32 %v573, %v557
        %v575 = vand.u32 2147483647, %v557
        %vm576 = vcmp.lt.f32.partialorder %v575, 0.0004427343
        %v577 = vsel %vm576, %v574, %v571
        %v578 = vadd.f32 %v559, 1.0
        %v579 = vlog2.pop %v578
        %v580 = vmul.f32 %v579, 0.6931472
        %v581 = vmul.f32 -0.5, %v559
        %v582 = vadd.f32 %v581, 1.0
        %v583 = vmul.f32 %v582, %v559
        %v584 = vand.u32 2147483647, %v559
        %vm585 = vcmp.lt.f32.partialorder %v584, 0.0004427343
        %v586 = vsel %vm585, %v583, %v580
        %v587 = vsel %vm551, %v538, %v568
        %v588 = vsel %vm552, %v543, %v577
        %v589 = vsel %vm553, %v548, %v586
        %590 = vset.pattern.permute.xlu0 3
        %591 = vperm.xlu0 %590, %v152
        %v592 = vpop.permute.xlu0 %591
        %594 = vset.pattern.permute.xlu0 3
        %595 = vperm.xlu0 %594, %v153
        %v596 = vpop.permute.xlu0 %595
        %598 = vset.pattern.permute.xlu0 3
        %599 = vperm.xlu0 %598, %v154
        %v600 = vpop.permute.xlu0 %599
        %v603 = vsel %vm315, %v149, 0
        %v606 = vsel %vm315, %v150, 0
        %v609 = vsel %vm315, %v151, 0
        %v612 = vsel %vm180, %v589, 0
        %614 = vmatprep.subr.mxu0 0.0
        %615 = vmatpush1.msra.mxu0 %v587
        %616 = vmatprep.subr.mxu0 0.0
        %617 = vmatpush1.msra.mxu0 %v588
        %618 = vmatprep.subr.mxu0 0.0
        %619 = vmatpush1.msra.mxu0 %v612
        %620 = vmatprep.subr.mxu0 0.0
        %621 = vmatpush1.msra.mxu0 0.0
        %622 = vmatprep.subr.mxu0 0.0
        %623 = vmatpush1.msra.mxu0 0.0
        %624 = vmatprep.subr.mxu0 0.0
        %625 = vmatpush1.msra.mxu0 0.0
        %626 = vmatprep.subr.mxu0 0.0
        %627 = vmatpush1.msra.mxu0 0.0
        %628 = vmatprep.subr.mxu0 0.0
        %629 = vmatpush1.msra.mxu0 0.0
        %630 = vmatprep.subr.mxu0 0.0
        %631 = vmatpush1.msra.mxu0 0.0
        %632 = vmatprep.subr.mxu0 0.0
        %633 = vmatpush1.msra.mxu0 0.0
        %634 = vmatprep.subr.mxu0 0.0
        %635 = vmatpush1.msra.mxu0 0.0
        %636 = vmatprep.subr.mxu0 0.0
        %637 = vmatpush1.msra.mxu0 0.0
        %638 = vmatprep.subr.mxu0 0.0
        %639 = vmatpush1.msra.mxu0 0.0
        %640 = vmatprep.subr.mxu0 0.0
        %641 = vmatpush1.msra.mxu0 0.0
        %642 = vmatprep.subr.mxu0 0.0
        %643 = vmatpush1.msra.mxu0 0.0
        %644 = vmatprep.subr.mxu0 0.0
        %645 = vmatpush1.msra.mxu0 0.0
        %646 = vmatprep.subr.mxu0 0.0
        %647 = vmatpush1.msra.mxu0 0.0
        %648 = vmatprep.subr.mxu0 0.0
        %649 = vmatpush1.msra.mxu0 0.0
        %650 = vmatprep.subr.mxu0 0.0
        %651 = vmatpush1.msra.mxu0 0.0
        %652 = vmatprep.subr.mxu0 0.0
        %653 = vmatpush1.msra.mxu0 0.0
        %654 = vmatprep.subr.mxu0 0.0
        %655 = vmatpush1.msra.mxu0 0.0
        %656 = vmatprep.subr.mxu0 0.0
        %657 = vmatpush1.msra.mxu0 0.0
        %658 = vmatprep.subr.mxu0 0.0
        %659 = vmatpush1.msra.mxu0 0.0
        %660 = vmatprep.subr.mxu0 0.0
        %661 = vmatpush1.msra.mxu0 0.0
        %662 = vmatprep.subr.mxu0 0.0
        %663 = vmatpush1.msra.mxu0 0.0
        %664 = vmatprep.subr.mxu0 0.0
        %665 = vmatpush1.msra.mxu0 0.0
        %666 = vmatprep.subr.mxu0 0.0
        %667 = vmatpush1.msra.mxu0 0.0
        %668 = vmatprep.subr.mxu0 0.0
        %669 = vmatpush1.msra.mxu0 0.0
        %670 = vmatprep.subr.mxu0 0.0
        %671 = vmatpush1.msra.mxu0 0.0
        %672 = vmatprep.subr.mxu0 0.0
        %673 = vmatpush1.msra.mxu0 0.0
        %674 = vmatprep.subr.mxu0 0.0
        %675 = vmatpush1.msra.mxu0 0.0
        %676 = vmatprep.subr.mxu0 0.0
        %677 = vmatpush1.msra.mxu0 0.0
        %678 = vmatprep.mubr.f32.mxu0 0.0
        %679 = vmatmul.mubr.f32.gmra.mrb[0].mxu0 %v603
        %v680 = vpop.f32.mrb[0].mxu0
        %v681 = vadd.f32 %v592, %v680
        %v682 = vpop.f32.mrb[0].mxu0
        %683 = vmatprep.mubr.f32.mxu0 0.0
        %684 = vmatmul.mubr.f32.gmra.mrb[0].mxu0 %v606
        %v685 = vpop.f32.mrb[0].mxu0
        %v686 = vadd.f32 %v596, %v685
        %v687 = vpop.f32.mrb[0].mxu0
        %688 = vmatprep.mubr.f32.mxu0 0.0
        %689 = vmatmul.mubr.f32.gmra.mrb[0].mxu0 %v609
        %v690 = vpop.f32.mrb[0].mxu0
        %v691 = vadd.f32 %v600, %v690
        %v692 = vpop.f32.mrb[0].mxu0
        %693 = vdwg.mxu0
        %694 = vst [vmem:[%s134] sm:$0xff] %v681
        %695 = vst [vmem:[%s134 + $0x8] sm:$0xff] %v686
        %696 = vst [vmem:[%s134 + $0x10] sm:$0xf] %v691
        %s697 = sand.u32 %s71, 1
        %s698 = scalar_lea.sflag [#allocation3], %s697
        %s699 = sand.u32 %s71, 1
        %s700 = smul.addr %s699, 24
        %s701 = scalar_lea.vmem [#allocation2], %s700
        // Predicated region
        $region29: #{model_latent_f.1} parent=27 // pred_check
          %p702 = pneg %p81
        $region30: #{model_latent_f.1} parent=27 // pred_check_branch
          %704 = sbr.rel (%p702) target = $region32
        $region31: #{model_latent_f.1} parent=27 // pred_region
          %s706 = ssub.s32 384, 384
          %707 = vsyncadd %s698, %s706
          %s708 = smul.addr %s16, 128
          %s709 = scalar_lea.hbm %s2, %s708
          %s710 = sshll.u32 %s701, 4
          %s711 = int_to_ptr.vmem [resolvable:$true] %s710
          %716 = dma.vmem_to_hbm [thread:$0]  %s711, 384, %s709, %s698, 128, 256, 8
        $region32: #{model_latent_f.1} parent=27 // pred_fallthru
          _
      $region28: #{model_latent_f.1} parent=5 // pred_fallthru
        _
      %p717 = scmp.le.s32.totalorder 2, %s11
      // Predicated region
      $region33: #{model_latent_f.1} parent=5 // pred_check
        %p718 = pneg %p717
      $region34: #{model_latent_f.1} parent=5 // pred_check_branch
        %720 = sbr.rel (%p718) target = $region36
      $region35: #{model_latent_f.1} parent=5 // pred_region
        %s721 = ssub.s32 %s11, 2
        // Predicated region
        $region37: #{model_latent_f.1} parent=35 // pred_check
          %p722 = pneg %p87
        $region38: #{model_latent_f.1} parent=35 // pred_check_branch
          %724 = sbr.rel (%p722) target = $region40
        $region39: #{model_latent_f.1} parent=35 // pred_region
          %s725 = sand.u32 %s72, 1
          %s726 = scalar_lea.sflag [#allocation3], %s725
          %s727 = sand.u32 %s72, 1
          %s728 = smul.addr %s727, 24
          %s729 = scalar_lea.vmem [#allocation2], %s728
          %730 = dma.done %s726, 384
        $region40: #{model_latent_f.1} parent=35 // pred_fallthru
          _
      $region36: #{model_latent_f.1} parent=5 // pred_fallthru
        _
    $region6: #{model_latent_f.1} parent=1 // loop_footer
      %s15 = sadd.s32 1, %s11
    $region7: #{model_latent_f.1} parent=1 // loop_footer_branch
      %10 = sbr.rel target = $region3
    $region8: #{model_latent_f.1} parent=1 // loop_exit
      _
    %731 = vsyncpa [#allocation3], 1
    %s732 = scalar_lea.sflag [#allocation3], 1
    %733 = vsyncpa %s732, 1

</llo_original>
